<compile_context>
chip_gen: v6e
topology: v6e:2x2x1
jax: 0.10.0
libtpu: 0.0.40
codegen_flags: <defaults>
</compile_context>

<pallas_src>
import jax
import jax.numpy as jnp
from jax.experimental import pallas as pl
from jax.experimental.pallas import tpu as pltpu

_LANE = 128   # f32 lane width of a vreg
_SUB = 8      # f32 sublane count of a vreg


def _ru(x, m):
    return ((x + m - 1) // m) * m


def _softmax_epilogue(bias_ref, mask_ref, out_ref, scores):
    scores = jnp.tanh(scores + bias_ref[0, 0])                 # scalar bias from SMEM
    max_score = jnp.max(scores, axis=1, keepdims=True)         # max over UNmasked scores
    e = jnp.exp(scores - max_score) * mask_ref[...].astype(jnp.float32)
    denom = jnp.sum(e, axis=1, keepdims=True)
    # approx=True rides the EUP slot; softmax weights do not need a bit-exact reciprocal.
    out_ref[...] = (e * pl.reciprocal(denom, approx=True)).astype(out_ref.dtype)


def _attention_kernel_flat(bias_ref, wt_ref, sel_ref, avg_ref, op_ref, mask_ref, out_ref):
    """Lane-dense path (H < 128): op block is (TB, T*H)."""
    T = sel_ref.shape[1]
    # mid[b, h] = sum_k W[h, k] * avg[b, k] == (avg @ W^T)[b, h]   -- native MXU contraction.
    mid = jnp.dot(avg_ref[...], wt_ref[...], preferred_element_type=jnp.float32)     # (TB, H)
    # tiled[b, t*H + h] = mid[b, h]   (lane concat; XLU slot, cheap, kernel is mem-bound)
    tiled_mid = jnp.concatenate([mid] * T, axis=-1)                                   # (TB, T*H)
    weighted = op_ref[...].astype(jnp.float32) * tiled_mid                            # (TB, T*H)
    # scores[b, t] = sum_h weighted[b, t*H + h]: one MXU matmul vs a 0/1 selection matrix.
    scores = jnp.dot(weighted, sel_ref[...], preferred_element_type=jnp.float32)      # (TB, T)
    _softmax_epilogue(bias_ref, mask_ref, out_ref, scores)


def _attention_kernel_3d(bias_ref, wt_ref, avg_ref, op_ref, mask_ref, out_ref):
    """General path: op block is (TB, T, H), mul + lane reduce keeps H on lanes."""
    mid = jnp.dot(avg_ref[...], wt_ref[...], preferred_element_type=jnp.float32)      # (TB, H)
    op_blk = op_ref[...].astype(jnp.float32)                                          # (TB, T, H)
    scores = jnp.sum(op_blk * mid[:, None, :], axis=-1)                               # (TB, T)
    _softmax_epilogue(bias_ref, mask_ref, out_ref, scores)


def attention_layer(weights, bias, op, avg_pool, mask, *, block_b=1024):
    """weights: (H, H), bias: scalar/(1,), op: (B, T, H), avg_pool: (B, H), mask: (B, T).

    Returns (B, T) float32 attention weights. A row whose mask is all zero yields NaN (0/0),
    exactly like the PyTorch reference.
    """
    B, T, H = op.shape
    op = jnp.asarray(op)
    avg_pool = jnp.asarray(avg_pool)
    mask = jnp.asarray(mask)
    if not jnp.issubdtype(mask.dtype, jnp.floating):
        mask = mask.astype(jnp.float32)
    # op/avg_pool/mask keep their storage dtype (bf16 stays narrow on the DMA); the kernel
    # upcasts per block so tanh/exp/normalize stay in f32.
    w_t = jnp.asarray(weights).T                        # one-time transpose: mid = avg @ W^T
    bias = jnp.asarray(bias, jnp.float32).reshape(1, 1)

    # Lane-dense specialization for small H (keeps the selection matrix tiny).
    use_flat = (H % _LANE != 0) and (T <= 128) and (T * H * T * 4 <= (1 << 20))

    # ---- generation-aware VMEM budgeting -------------------------------------------------
    try:
        vmem_cap = int(pltpu.get_tpu_info().vmem_capacity_bytes)   # 128 MiB v5e/v6e, 64 MiB v7x
    except Exception:
        vmem_cap = 64 * 1024 * 1024                                # conservative (v7x) default

    op_item = jnp.dtype(op.dtype).itemsize
    avg_item = jnp.dtype(avg_pool.dtype).itemsize
    mask_item = jnp.dtype(mask.dtype).itemsize
    w_item = jnp.dtype(w_t.dtype).itemsize

    # Per batch-row VMEM bytes of every pipelined (double-buffered) block, lane-padding included.
    if use_flat:
        op_row = _ru(T * H, _LANE) * op_item
    else:
        op_row = T * _ru(H, _LANE) * op_item
    row_bytes = (op_row
                 + _ru(H, _LANE) * avg_item             # avg_pool block
                 + _ru(T, _LANE) * mask_item            # mask block
                 + _ru(T, _LANE) * 4)                   # f32 output block
    const_bytes = _ru(H, _SUB) * _ru(H, _LANE) * w_item
    if use_flat:
        const_bytes += _ru(T * H, _SUB) * _ru(T, _LANE) * 4      # selection matrix

    # ~45% of VMEM for pipelined blocks: ~57 MiB on v5e/v6e, ~28 MiB on v7x.
    blk_budget = int(vmem_cap * 0.45)
    avail = max(blk_budget - 2 * const_bytes, 2 * _SUB * row_bytes)
    tb_cap = max(_SUB, (avail // (2 * row_bytes)) // _SUB * _SUB)

    TB = min(block_b, tb_cap)
    if B >= 2 * _SUB:
        # Keep >= 2 grid steps so ("parallel",) can use both TensorCores on v7x.
        TB = min(TB, _ru(pl.cdiv(B, 2), _SUB))
    if TB >= B:
        TB = B                                          # full-dim block (no 8-row requirement)
    else:
        TB = max(_SUB, (TB // _SUB) * _SUB)
    grid_b = pl.cdiv(B, TB)                             # ragged last block is clipped by Pallas

    est = 2 * _ru(TB, _SUB) * row_bytes + 2 * const_bytes + (2 << 20)
    vmem_limit = int(min(vmem_cap, max(est, 32 << 20)))

    out_shape = jax.ShapeDtypeStruct((B, T), jnp.float32)
    compiler_params = pltpu.CompilerParams(
        dimension_semantics=("parallel",),              # batch blocks are independent
        vmem_limit_bytes=vmem_limit)

    if use_flat:
        op_in = op.reshape(B, T * H)                    # trailing-dim merge: free, lane-dense DMA
        sel = (jnp.arange(T * H, dtype=jnp.int32)[:, None] // H
               == jnp.arange(T, dtype=jnp.int32)[None, :]).astype(jnp.float32)   # (T*H, T)
        return pl.pallas_call(
            _attention_kernel_flat,
            out_shape=out_shape,
            grid_spec=pltpu.PrefetchScalarGridSpec(
                num_scalar_prefetch=0,
                grid=(grid_b,),
                in_specs=[
                    pl.BlockSpec(memory_space=pltpu.MemorySpace.SMEM),   # bias scalar
                    pl.BlockSpec((H, H), lambda b: (0, 0)),              # W^T (shared)
                    pl.BlockSpec((T * H, T), lambda b: (0, 0)),          # selection matrix
                    pl.BlockSpec((TB, H), lambda b: (b, 0)),             # avg_pool block
                    pl.BlockSpec((TB, T * H), lambda b: (b, 0)),         # op block (lane-dense)
                    pl.BlockSpec((TB, T), lambda b: (b, 0)),             # mask block
                ],
                out_specs=pl.BlockSpec((TB, T), lambda b: (b, 0)),
            ),
            compiler_params=compiler_params,
        )(bias, w_t, sel, avg_pool, op_in, mask)

    return pl.pallas_call(
        _attention_kernel_3d,
        out_shape=out_shape,
        grid_spec=pltpu.PrefetchScalarGridSpec(
            num_scalar_prefetch=0,
            grid=(grid_b,),
            in_specs=[
                pl.BlockSpec(memory_space=pltpu.MemorySpace.SMEM),       # bias scalar
                pl.BlockSpec((H, H), lambda b: (0, 0)),                  # W^T (shared)
                pl.BlockSpec((TB, H), lambda b: (b, 0)),                 # avg_pool block
                pl.BlockSpec((TB, T, H), lambda b: (b, 0, 0)),           # op block
                pl.BlockSpec((TB, T), lambda b: (b, 0)),                 # mask block
            ],
            out_specs=pl.BlockSpec((TB, T), lambda b: (b, 0)),
        ),
        compiler_params=compiler_params,
    )(bias, w_t, avg_pool, op, mask)


def attention_layer_ref(weights, bias, op, avg_pool, mask):
    """Pure-JAX reference mirroring the PyTorch forward."""
    mid = jnp.einsum('hk,bk->bh', weights, avg_pool)          # (B, H)
    scores = jnp.einsum('bth,bh->bt', op, mid)                # (B, T)
    scores = jnp.tanh(scores + jnp.reshape(bias, ()))
    scores = scores - jnp.max(scores, axis=1, keepdims=True)
    scores = jnp.exp(scores) * mask
    return scores / jnp.sum(scores, axis=1, keepdims=True)


if __name__ == "__main__":
    B, T, H = 2, 8, 32

    key = jax.random.PRNGKey(0)
    k_w, k_op, k_avg, k_mask = jax.random.split(key, 4)

    scale_fact, trans_fact = 0.2, -0.1
    # nn.Parameter(torch.rand(H, H) * 0.2 - 0.1)
    weights = jax.random.uniform(k_w, (H, H), jnp.float32) * scale_fact + trans_fact
    bias = jnp.zeros((1,), jnp.float32)              # nn.Parameter(torch.zeros(1))

    op = jax.random.normal(k_op, (B, T, H), jnp.float32)
    avg_pool = jax.random.normal(k_avg, (B, H), jnp.float32)
    # binary mask with at least one valid position per row
    mask = (jax.random.uniform(k_mask, (B, T), jnp.float32) > 0.3).astype(jnp.float32)
    mask = mask.at[:, 0].set(1.0)

    out = jax.block_until_ready(attention_layer(weights, bias, op, avg_pool, mask))
    ref = attention_layer_ref(weights, bias, op, avg_pool, mask)

    assert out.shape == (B, T)
    # Tolerance is 1e-3 because the normalize uses the EUP approximate reciprocal
    # (pl.reciprocal(approx=True)); observed error is far smaller in practice.
    assert jnp.allclose(out, ref, atol=1e-3, rtol=1e-3), "mismatch vs reference"

    print("KERNEL_OK")
</pallas_src>

<mosaic_0001>
module attributes {stable_mosaic.version = 11 : i64} {
  func.func @_attention_kernel_flat(%arg0: i32, %arg1: memref<1x1xf32, #tpu.memory_space<smem>>, %arg2: memref<32x32xf32, #tpu.memory_space<vmem>>, %arg3: memref<256x8xf32, #tpu.memory_space<vmem>>, %arg4: memref<2x32xf32, #tpu.memory_space<vmem>>, %arg5: memref<2x256xf32, #tpu.memory_space<vmem>>, %arg6: memref<2x8xf32, #tpu.memory_space<vmem>>, %arg7: memref<2x8xf32, #tpu.memory_space<vmem>>) attributes {dimension_semantics = [#tpu.dimension_semantics<parallel>], iteration_bounds = array<i64: 1>, scalar_prefetch = 0 : i64, scratch_operands = 0 : i64, tpu.core_type = #tpu.core_type<tc>, window_params = [{transform_indices = @transform_0, window_bounds = array<i64: 1, 1>}, {pipeline_mode = #tpu.pipeline_mode<synchronous>, transform_indices = @transform_1, window_bounds = array<i64: 32, 32>}, {pipeline_mode = #tpu.pipeline_mode<synchronous>, transform_indices = @transform_2, window_bounds = array<i64: 256, 8>}, {transform_indices = @transform_3, window_bounds = array<i64: 2, 32>}, {transform_indices = @transform_4, window_bounds = array<i64: 2, 256>}, {transform_indices = @transform_5, window_bounds = array<i64: 2, 8>}, {transform_indices = @transform_6, window_bounds = array<i64: 2, 8>}]} {
    %c0 = arith.constant 0 : index
    %c0_0 = arith.constant 0 : index
    %0 = vector.load %arg4[%c0, %c0_0] : memref<2x32xf32, #tpu.memory_space<vmem>>, vector<2x32xf32>
    %c0_1 = arith.constant 0 : index
    %c0_2 = arith.constant 0 : index
    %1 = vector.load %arg2[%c0_1, %c0_2] : memref<32x32xf32, #tpu.memory_space<vmem>>, vector<32x32xf32>
    %cst = arith.constant dense<0.000000e+00> : vector<2x32xf32>
    %2 = tpu.matmul %0, %1, %cst {dimension_numbers = #tpu.dot_dimension_numbers<[1], [0], [0], [1], [0, 0, 1, 1], [], []>} : vector<2x32xf32>, vector<32x32xf32>, vector<2x32xf32> -> vector<2x32xf32>
    %3 = tpu.concatenate %2, %2, %2, %2, %2, %2, %2, %2 in 1 : vector<2x32xf32>, vector<2x32xf32>, vector<2x32xf32>, vector<2x32xf32>, vector<2x32xf32>, vector<2x32xf32>, vector<2x32xf32>, vector<2x32xf32> -> vector<2x256xf32>
    %c0_3 = arith.constant 0 : index
    %c0_4 = arith.constant 0 : index
    %4 = vector.load %arg5[%c0_3, %c0_4] : memref<2x256xf32, #tpu.memory_space<vmem>>, vector<2x256xf32>
    %5 = arith.mulf %4, %3 : vector<2x256xf32>
    %c0_5 = arith.constant 0 : index
    %c0_6 = arith.constant 0 : index
    %6 = vector.load %arg3[%c0_5, %c0_6] : memref<256x8xf32, #tpu.memory_space<vmem>>, vector<256x8xf32>
    %cst_7 = arith.constant dense<0.000000e+00> : vector<2x8xf32>
    %7 = tpu.matmul %5, %6, %cst_7 {dimension_numbers = #tpu.dot_dimension_numbers<[1], [0], [0], [1], [0, 0, 1, 1], [], []>} : vector<2x256xf32>, vector<256x8xf32>, vector<2x8xf32> -> vector<2x8xf32>
    %c0_8 = arith.constant 0 : index
    %c0_9 = arith.constant 0 : index
    %8 = memref.load %arg1[%c0_8, %c0_9] : memref<1x1xf32, #tpu.memory_space<smem>>
    %9 = vector.broadcast %8 : f32 to vector<2x8xf32>
    %10 = arith.addf %7, %9 : vector<2x8xf32>
    %11 = math.tanh %10 : vector<2x8xf32>
    %cst_10 = arith.constant dense<0xFF800000> : vector<2xf32>
    %12 = vector.multi_reduction <maximumf>, %11, %cst_10 [1] : vector<2x8xf32> to vector<2xf32>
    %13 = vector.shape_cast %12 : vector<2xf32> to vector<2x1xf32>
    %14 = vector.broadcast %13 : vector<2x1xf32> to vector<2x8xf32>
    %15 = arith.subf %11, %14 : vector<2x8xf32>
    %16 = math.exp %15 : vector<2x8xf32>
    %c0_11 = arith.constant 0 : index
    %c0_12 = arith.constant 0 : index
    %17 = vector.load %arg6[%c0_11, %c0_12] : memref<2x8xf32, #tpu.memory_space<vmem>>, vector<2x8xf32>
    %18 = arith.mulf %16, %17 : vector<2x8xf32>
    %cst_13 = arith.constant dense<0.000000e+00> : vector<2xf32>
    %19 = vector.multi_reduction <add>, %18, %cst_13 [1] : vector<2x8xf32> to vector<2xf32>
    %20 = vector.shape_cast %19 : vector<2xf32> to vector<2x1xf32>
    %21 = tpu.reciprocal %20 {approx = true} : vector<2x1xf32> -> vector<2x1xf32>
    %22 = vector.broadcast %21 : vector<2x1xf32> to vector<2x8xf32>
    %23 = arith.mulf %18, %22 : vector<2x8xf32>
    %c0_14 = arith.constant 0 : index
    %c0_15 = arith.constant 0 : index
    %24 = vector.load %arg7[%c0_14, %c0_15] : memref<2x8xf32, #tpu.memory_space<vmem>>, vector<2x8xf32>
    tpu.vector_store %arg7[%c0_14, %c0_15], %23 {strides = array<i32>} : memref<2x8xf32, #tpu.memory_space<vmem>>, vector<2x8xf32>,
    return
  }
  func.func @transform_0(%arg0: i32) -> (i32, i32) {
    %c0_i32 = arith.constant 0 : i32
    %c0_i32_0 = arith.constant 0 : i32
    %c0_i32_1 = arith.constant 0 : i32
    return %c0_i32, %c0_i32_0 : i32, i32
  }
  func.func @transform_1(%arg0: i32) -> (i32, i32) {
    %c0_i32 = arith.constant 0 : i32
    %c0_i32_0 = arith.constant 0 : i32
    %c0_i32_1 = arith.constant 0 : i32
    return %c0_i32, %c0_i32_0 : i32, i32
  }
  func.func @transform_2(%arg0: i32) -> (i32, i32) {
    %c0_i32 = arith.constant 0 : i32
    %c0_i32_0 = arith.constant 0 : i32
    %c0_i32_1 = arith.constant 0 : i32
    return %c0_i32, %c0_i32_0 : i32, i32
  }
  func.func @transform_3(%arg0: i32) -> (i32, i32) {
    %c0_i32 = arith.constant 0 : i32
    %c0_i32_0 = arith.constant 0 : i32
    return %arg0, %c0_i32 : i32, i32
  }
  func.func @transform_4(%arg0: i32) -> (i32, i32) {
    %c0_i32 = arith.constant 0 : i32
    %c0_i32_0 = arith.constant 0 : i32
    return %arg0, %c0_i32 : i32, i32
  }
  func.func @transform_5(%arg0: i32) -> (i32, i32) {
    %c0_i32 = arith.constant 0 : i32
    %c0_i32_0 = arith.constant 0 : i32
    return %arg0, %c0_i32 : i32, i32
  }
  func.func @transform_6(%arg0: i32) -> (i32, i32) {
    %c0_i32 = arith.constant 0 : i32
    %c0_i32_0 = arith.constant 0 : i32
    return %arg0, %c0_i32 : i32, i32
  }
}

</mosaic_0001>

<llo_original>
// kernel: tpu_custom_call.1
$region0: #{tpu_custom_call.1}
  #allocation0 [shape = 'u32[]', space=smem, size = 0x4, offset = 0x4, fixed_abs, tag = 'smem constant byte address 0x4 - core index']
  #allocation1 [shape = 'u32[144,128]{1,0:T(1,128)}', space=vmem, size = 0x12000, scoped, tag = 'internal scratch']
  #allocation2 [shape = 'f32[1,1]{1,0:T(1,128)S(6)}', space=smem, size = 0x200, scoped, tag = 'scoped memory for tpu_custom_call.1']
  %s0 = inlined_call_operand.<no memory space> [shape: f32[1,1], index: 0, kind: input, shape index: {}]
  %s1 = inlined_call_operand.vmem [shape: f32[32,32], index: 1, kind: input, shape index: {}]
  %s2 = inlined_call_operand.vmem [shape: f32[256,8], index: 2, kind: input, shape index: {}]
  %s3 = inlined_call_operand.vmem [shape: f32[2,32], index: 3, kind: input, shape index: {}]
  %s4 = inlined_call_operand.vmem [shape: f32[2,256], index: 4, kind: input, shape index: {}]
  %s5 = inlined_call_operand.vmem [shape: f32[2,8], index: 5, kind: input, shape index: {}]
  %s6 = inlined_call_operand.hbm [shape: f32[2,8], index: 6, kind: output, shape index: {}]
  %s7 = sld [smem:[#allocation0]]
  $region34: #{tpu_custom_call.1} parent=0
    _
  %s9 = ssub.s32 1, %s7
  %s10 = scalar_select 0, %s9, %s7
  %11 = sst [smem:[#allocation2]] %s0
  $region1: #{tpu_custom_call.1} parent=0
    #allocation3 [shape = 'u8[1024]{0}', space=vmem, size = 0x400, scoped, tag = 'output window, operand 0, single buffered']
    #allocation4 [shape = 's32[1]{0}', space=sflag, size = 0x4, scoped, tag = 'scoped memory for tpu_custom_call.1']
    %12 = vsyncpa [#allocation4], 0
    // Predicated region
    $region2: #{tpu_custom_call.1} parent=1 // pred_check
      _
    $region3: #{tpu_custom_call.1} parent=1 // pred_check_branch
      %14 = sbr.rel (0) target = $region5
    $region4: #{tpu_custom_call.1} parent=1 // pred_region
      _
    $region5: #{tpu_custom_call.1} parent=1 // pred_fallthru
      _
    // Predicated region
    $region6: #{tpu_custom_call.1} parent=1 // pred_check
      _
    $region7: #{tpu_custom_call.1} parent=1 // pred_check_branch
      %16 = sbr.rel (0) target = $region9
    $region8: #{tpu_custom_call.1} parent=1 // pred_region
      _
    $region9: #{tpu_custom_call.1} parent=1 // pred_fallthru
      _
    // Predicated region
    $region10: #{tpu_custom_call.1} parent=1 // pred_check
      _
    $region11: #{tpu_custom_call.1} parent=1 // pred_check_branch
      %18 = sbr.rel (0) target = $region13
    $region12: #{tpu_custom_call.1} parent=1 // pred_region
      _
    $region13: #{tpu_custom_call.1} parent=1 // pred_fallthru
      _
    // Predicated region
    $region14: #{tpu_custom_call.1} parent=1 // pred_check
      _
    $region15: #{tpu_custom_call.1} parent=1 // pred_check_branch
      %20 = sbr.rel (0) target = $region17
    $region16: #{tpu_custom_call.1} parent=1 // pred_region
      _
    $region17: #{tpu_custom_call.1} parent=1 // pred_fallthru
      _
    // Predicated region
    $region18: #{tpu_custom_call.1} parent=1 // pred_check
      _
    $region19: #{tpu_custom_call.1} parent=1 // pred_check_branch
      %22 = sbr.rel (0) target = $region21
    $region20: #{tpu_custom_call.1} parent=1 // pred_region
      _
    $region21: #{tpu_custom_call.1} parent=1 // pred_fallthru
      _
    // Predicated region
    $region22: #{tpu_custom_call.1} parent=1 // pred_check
      _
    $region23: #{tpu_custom_call.1} parent=1 // pred_check_branch
      %24 = sbr.rel (0) target = $region25
    $region24: #{tpu_custom_call.1} parent=1 // pred_region
      _
    $region25: #{tpu_custom_call.1} parent=1 // pred_fallthru
      _
    %v25 = vld [vmem:[%s3] sm:$0x3]
    %v26 = vld [vmem:[%s1] sm:$0xff]
    %v27 = vld [vmem:[%s1 + $0x8] sm:$0xff]
    %v28 = vld [vmem:[%s1 + $0x10] sm:$0xff]
    %v29 = vld [vmem:[%s1 + $0x18] sm:$0xff]
    %vm30 = vcmask 261120
    %v32 = vsel %vm30, %v25, 0
    %34 = vmatprep.subr.mxu0 0.0
    %35 = vmatpush1.msra.mxu0 0.0
    %36 = vmatprep.subr.mxu0 0.0
    %37 = vmatpush1.msra.mxu0 0.0
    %38 = vmatprep.subr.mxu0 0.0
    %39 = vmatpush1.msra.mxu0 0.0
    %40 = vmatprep.subr.mxu0 0.0
    %41 = vmatpush1.msra.mxu0 0.0
    %42 = vmatprep.subr.mxu0 0.0
    %43 = vmatpush1.msra.mxu0 0.0
    %44 = vmatprep.subr.mxu0 0.0
    %45 = vmatpush1.msra.mxu0 0.0
    %46 = vmatprep.subr.mxu0 0.0
    %47 = vmatpush1.msra.mxu0 0.0
    %48 = vmatprep.subr.mxu0 0.0
    %49 = vmatpush1.msra.mxu0 0.0
    %50 = vmatprep.subr.mxu0 0.0
    %51 = vmatpush1.msra.mxu0 0.0
    %52 = vmatprep.subr.mxu0 0.0
    %53 = vmatpush1.msra.mxu0 0.0
    %54 = vmatprep.subr.mxu0 0.0
    %55 = vmatpush1.msra.mxu0 0.0
    %56 = vmatprep.subr.mxu0 0.0
    %57 = vmatpush1.msra.mxu0 0.0
    %58 = vmatprep.subr.mxu0 0.0
    %59 = vmatpush1.msra.mxu0 %v29
    %60 = vmatprep.subr.mxu0 0.0
    %61 = vmatpush1.msra.mxu0 %v28
    %62 = vmatprep.subr.mxu0 0.0
    %63 = vmatpush1.msra.mxu0 %v27
    %64 = vmatprep.subr.mxu0 0.0
    %65 = vmatpush1.msra.mxu0 %v26
    %66 = vmatprep.subr.mxu0 0.0
    %67 = vmatpush2.msra.mxu0 0.0
    %68 = vmatprep.subr.mxu0 0.0
    %69 = vmatpush2.msra.mxu0 0.0
    %70 = vmatprep.subr.mxu0 0.0
    %71 = vmatpush2.msra.mxu0 0.0
    %72 = vmatprep.subr.mxu0 0.0
    %73 = vmatpush2.msra.mxu0 0.0
    %74 = vmatprep.subr.mxu0 0.0
    %75 = vmatpush2.msra.mxu0 0.0
    %76 = vmatprep.subr.mxu0 0.0
    %77 = vmatpush2.msra.mxu0 0.0
    %78 = vmatprep.subr.mxu0 0.0
    %79 = vmatpush2.msra.mxu0 0.0
    %80 = vmatprep.subr.mxu0 0.0
    %81 = vmatpush2.msra.mxu0 0.0
    %82 = vmatprep.subr.mxu0 0.0
    %83 = vmatpush2.msra.mxu0 0.0
    %84 = vmatprep.subr.mxu0 0.0
    %85 = vmatpush2.msra.mxu0 0.0
    %86 = vmatprep.subr.mxu0 0.0
    %87 = vmatpush2.msra.mxu0 0.0
    %88 = vmatprep.subr.mxu0 0.0
    %89 = vmatpush2.msra.mxu0 0.0
    %90 = vmatprep.subr.mxu0 0.0
    %91 = vmatpush2.msra.mxu0 0.0
    %92 = vmatprep.subr.mxu0 0.0
    %93 = vmatpush2.msra.mxu0 0.0
    %94 = vmatprep.subr.mxu0 0.0
    %95 = vmatpush2.msra.mxu0 0.0
    %96 = vmatprep.subr.mxu0 0.0
    %97 = vmatpush2.msra.mxu0 0.0
    %98 = vmatprep.mubr.f32.mxu0 0.0
    %99 = vmatmul.mubr.f32.gmra.mxu0 %v32
    %v100 = vpop.f32.mrf.mxu0
    %v101 = vadd.f32 0.0, %v100
    %v102 = vpop.f32.mrf.mxu0
    %103 = vdwg.mxu0
    %105 = vrot.lane.b32.xlu0 %v101, 32
    %v106 = vpop.permute.xlu0 %105
    %108 = vrot.lane.b32.xlu0 %v101, 64
    %v109 = vpop.permute.xlu0 %108
    %111 = vrot.lane.b32.xlu0 %v101, 96
    %v112 = vpop.permute.xlu0 %111
    %v114 = vsel %vm30, %v101, %v106
    %vm115 = vcmask 523264
    %v116 = vsel %vm115, %v114, %v109
    %vm117 = vcmask 785408
    %v118 = vsel %vm117, %v116, %v112
    %v119 = vld [vmem:[%s4] sm:$0xf]
    %v121 = vcombine.low %v118, %v118
    %v123 = vunpack.c.l.s4 1983009808
    %v124 = vunpack.c.0.s8 %v123
    %v125 = vlaneseq
    %v126 = vshrl.u32 %v125, 7
    %v127 = vsub.s32 %v124, %v126
    %v128 = vrot.slane %v121, %v127
    %v130 = vmul.f32 %v119, %v128
    %v131 = vld [vmem:[%s2] sm:$0xff]
    %v132 = vld [vmem:[%s2 + $0x8] sm:$0xff]
    %v133 = vld [vmem:[%s2 + $0x10] sm:$0xff]
    %v134 = vld [vmem:[%s2 + $0x18] sm:$0xff]
    %v135 = vld [vmem:[%s2 + $0x20] sm:$0xff]
    %v136 = vld [vmem:[%s2 + $0x28] sm:$0xff]
    %v137 = vld [vmem:[%s2 + $0x30] sm:$0xff]
    %v138 = vld [vmem:[%s2 + $0x38] sm:$0xff]
    %v139 = vld [vmem:[%s2 + $0x40] sm:$0xff]
    %v140 = vld [vmem:[%s2 + $0x48] sm:$0xff]
    %v141 = vld [vmem:[%s2 + $0x50] sm:$0xff]
    %v142 = vld [vmem:[%s2 + $0x58] sm:$0xff]
    %v143 = vld [vmem:[%s2 + $0x60] sm:$0xff]
    %v144 = vld [vmem:[%s2 + $0x68] sm:$0xff]
    %v145 = vld [vmem:[%s2 + $0x70] sm:$0xff]
    %v146 = vld [vmem:[%s2 + $0x78] sm:$0xff]
    %v147 = vld [vmem:[%s2 + $0x80] sm:$0xff]
    %v148 = vld [vmem:[%s2 + $0x88] sm:$0xff]
    %v149 = vld [vmem:[%s2 + $0x90] sm:$0xff]
    %v150 = vld [vmem:[%s2 + $0x98] sm:$0xff]
    %v151 = vld [vmem:[%s2 + $0xa0] sm:$0xff]
    %v152 = vld [vmem:[%s2 + $0xa8] sm:$0xff]
    %v153 = vld [vmem:[%s2 + $0xb0] sm:$0xff]
    %v154 = vld [vmem:[%s2 + $0xb8] sm:$0xff]
    %v155 = vld [vmem:[%s2 + $0xc0] sm:$0xff]
    %v156 = vld [vmem:[%s2 + $0xc8] sm:$0xff]
    %v157 = vld [vmem:[%s2 + $0xd0] sm:$0xff]
    %v158 = vld [vmem:[%s2 + $0xd8] sm:$0xff]
    %v159 = vld [vmem:[%s2 + $0xe0] sm:$0xff]
    %v160 = vld [vmem:[%s2 + $0xe8] sm:$0xff]
    %v161 = vld [vmem:[%s2 + $0xf0] sm:$0xff]
    %v162 = vld [vmem:[%s2 + $0xf8] sm:$0xff]
    %s163 = sld [smem:[#allocation2]]
    %v164 = vstv %s163
    %v167 = vunpack.c.l.s4 1983009808
    %v168 = vunpack.c.0.s8 %v167
    %v169 = vlaneseq
    %v170 = vshrl.u32 %v169, 7
    %v171 = vsub.s32 %v168, %v170
    %v172 = vrot.slane %v130, %v171
    %v173 = vcombine.high %v172, %v172
    %176 = vmatprep.subr.mxu0 0.0
    %177 = vmatpush1.msra.mxu0 %v146
    %178 = vmatprep.subr.mxu0 0.0
    %179 = vmatpush1.msra.mxu0 %v145
    %180 = vmatprep.subr.mxu0 0.0
    %181 = vmatpush1.msra.mxu0 %v144
    %182 = vmatprep.subr.mxu0 0.0
    %183 = vmatpush1.msra.mxu0 %v143
    %184 = vmatprep.subr.mxu0 0.0
    %185 = vmatpush1.msra.mxu0 %v142
    %186 = vmatprep.subr.mxu0 0.0
    %187 = vmatpush1.msra.mxu0 %v141
    %188 = vmatprep.subr.mxu0 0.0
    %189 = vmatpush1.msra.mxu0 %v140
    %190 = vmatprep.subr.mxu0 0.0
    %191 = vmatpush1.msra.mxu0 %v139
    %192 = vmatprep.subr.mxu0 0.0
    %193 = vmatpush1.msra.mxu0 %v138
    %194 = vmatprep.subr.mxu0 0.0
    %195 = vmatpush1.msra.mxu0 %v137
    %196 = vmatprep.subr.mxu0 0.0
    %197 = vmatpush1.msra.mxu0 %v136
    %198 = vmatprep.subr.mxu0 0.0
    %199 = vmatpush1.msra.mxu0 %v135
    %200 = vmatprep.subr.mxu0 0.0
    %201 = vmatpush1.msra.mxu0 %v134
    %202 = vmatprep.subr.mxu0 0.0
    %203 = vmatpush1.msra.mxu0 %v133
    %204 = vmatprep.subr.mxu0 0.0
    %205 = vmatpush1.msra.mxu0 %v132
    %206 = vmatprep.subr.mxu0 0.0
    %207 = vmatpush1.msra.mxu0 %v131
    %208 = vmatprep.subr.mxu0 0.0
    %209 = vmatpush2.msra.mxu0 %v162
    %210 = vmatprep.subr.mxu0 0.0
    %211 = vmatpush2.msra.mxu0 %v161
    %212 = vmatprep.subr.mxu0 0.0
    %213 = vmatpush2.msra.mxu0 %v160
    %214 = vmatprep.subr.mxu0 0.0
    %215 = vmatpush2.msra.mxu0 %v159
    %216 = vmatprep.subr.mxu0 0.0
    %217 = vmatpush2.msra.mxu0 %v158
    %218 = vmatprep.subr.mxu0 0.0
    %219 = vmatpush2.msra.mxu0 %v157
    %220 = vmatprep.subr.mxu0 0.0
    %221 = vmatpush2.msra.mxu0 %v156
    %222 = vmatprep.subr.mxu0 0.0
    %223 = vmatpush2.msra.mxu0 %v155
    %224 = vmatprep.subr.mxu0 0.0
    %225 = vmatpush2.msra.mxu0 %v154
    %226 = vmatprep.subr.mxu0 0.0
    %227 = vmatpush2.msra.mxu0 %v153
    %228 = vmatprep.subr.mxu0 0.0
    %229 = vmatpush2.msra.mxu0 %v152
    %230 = vmatprep.subr.mxu0 0.0
    %231 = vmatpush2.msra.mxu0 %v151
    %232 = vmatprep.subr.mxu0 0.0
    %233 = vmatpush2.msra.mxu0 %v150
    %234 = vmatprep.subr.mxu0 0.0
    %235 = vmatpush2.msra.mxu0 %v149
    %236 = vmatprep.subr.mxu0 0.0
    %237 = vmatpush2.msra.mxu0 %v148
    %238 = vmatprep.subr.mxu0 0.0
    %239 = vmatpush2.msra.mxu0 %v147
    %240 = vmatprep.mubr.f32.mxu0 %v173
    %241 = vmatmul.mubr.f32.gmra.mxu0 %v172
    %v242 = vpop.f32.mrf.mxu0
    %v243 = vadd.f32 %v164, %v242
    %v244 = vpop.f32.mrf.mxu0
    %245 = vdwg.mxu0
    %v246 = vtanh.pop %v243
    %vm247 = vcmask 58368
    %v248 = vsel %vm247, %v246, -inf
    %249 = vmax.xlane.f32.xlu0 %v248
    %v250 = vpop.xlane.xlu0 %249
    %v251 = vsub.f32 %v246, %v250
    %v252 = vmul.f32 %v251, 1.442695
    %v253 = vpow.pop %v252
    %v254 = vld [vmem:[%s5] sm:$0x3]
    %v255 = vmul.f32 %v253, %v254
    %v256 = vsel %vm247, %v255, 0.0
    %257 = vadd.xlane.f32.xlu0 %v256
    %v258 = vpop.xlane.xlu0 %257
    %v259 = vrcp.pop %v258
    %v260 = vmul.f32 %v255, %v259
    %261 = vst.msk [vmem:[#allocation3] sm:$0x3] %vm247, %v260
    // Predicated region
    $region26: #{tpu_custom_call.1} parent=1 // pred_check
      _
    $region27: #{tpu_custom_call.1} parent=1 // pred_check_branch
      %263 = sbr.rel (0) target = $region29
    $region28: #{tpu_custom_call.1} parent=1 // pred_region
      %s265 = ssub.s32 32, 32
      %266 = vsyncadd [#allocation4], %s265
      %s268 = sshll.u32 [#allocation3], 4
      %s269 = int_to_ptr.vmem [resolvable:$true] %s268
      %271 = dma.vmem_to_hbm [thread:$0]  %s269, 32, %s6, [#allocation4]
    $region29: #{tpu_custom_call.1} parent=1 // pred_fallthru
      _
    // Predicated region
    $region30: #{tpu_custom_call.1} parent=1 // pred_check
      _
    $region31: #{tpu_custom_call.1} parent=1 // pred_check_branch
      %273 = sbr.rel (0) target = $region33
    $region32: #{tpu_custom_call.1} parent=1 // pred_region
      %274 = dma.done [#allocation4], 32
    $region33: #{tpu_custom_call.1} parent=1 // pred_fallthru
      _
    %275 = vsyncpa [#allocation4], 1

</llo_original>
